<compile_context>
chip_gen: v7x
topology: tpu7x:2x2x1
jax: 0.10.0
libtpu: 0.0.40
codegen_flags: <defaults>
</compile_context>

<pallas_src>
import functools

import jax
import jax.numpy as jnp
from jax import lax
from jax.experimental import pallas as pl
from jax.experimental.pallas import tpu as pltpu

_EPS = 1e-8
_LN10 = 2.302585092994046  # ln(10)


def _si_sdr_loss_kernel(s1_ref, s2_ref, e1_ref, e2_ref, loss_ref,
                        tt1_ref, tt2_ref, ee1_ref, ee2_ref,
                        te11_ref, te12_ref, te21_ref, te22_ref,
                        *, tile_t, total_t, needs_mask):
    k = pl.program_id(0)

    @pl.when(k == 0)
    def _init():
        for r in (tt1_ref, tt2_ref, ee1_ref, ee2_ref,
                  te11_ref, te12_ref, te21_ref, te22_ref):
            r[...] = jnp.zeros_like(r)

    s1 = s1_ref[...].astype(jnp.float32)
    s2 = s2_ref[...].astype(jnp.float32)
    e1 = e1_ref[...].astype(jnp.float32)
    e2 = e2_ref[...].astype(jnp.float32)

    if needs_mask:
        # Last block runs past the end of T; select 0 there (a select, not a
        # multiply, so undefined padding bytes can never produce NaN/Inf).
        col = k * tile_t + lax.broadcasted_iota(jnp.int32, s1.shape, 1)
        valid = col < total_t
        zero = jnp.zeros_like(s1)
        s1 = jnp.where(valid, s1, zero)
        s2 = jnp.where(valid, s2, zero)
        e1 = jnp.where(valid, e1, zero)
        e2 = jnp.where(valid, e2, zero)

    def rsum(x):
        return jnp.sum(x, axis=-1, keepdims=True)   # (B, 1)

    # 8 shared inner products for this T-tile (VPU products, lane reduces).
    tt1_ref[...] += rsum(s1 * s1)
    tt2_ref[...] += rsum(s2 * s2)
    ee1_ref[...] += rsum(e1 * e1)
    ee2_ref[...] += rsum(e2 * e2)
    te11_ref[...] += rsum(s1 * e1)
    te12_ref[...] += rsum(s1 * e2)
    te21_ref[...] += rsum(s2 * e1)
    te22_ref[...] += rsum(s2 * e2)

    @pl.when(k == pl.num_programs(0) - 1)
    def _finalize():
        def si_sdr_db(tt, ee, te):
            alpha = te / (tt + _EPS)
            num = alpha * alpha * tt                 # ||proj||^2
            den = ee - 2.0 * alpha * te + num        # ||est - proj||^2
            ratio = num / (den + _EPS) + _EPS
            return 10.0 * (jnp.log(ratio) / _LN10)   # 10 * log10(ratio)

        d11 = si_sdr_db(tt1_ref[...], ee1_ref[...], te11_ref[...])  # (s1, e1)
        d12 = si_sdr_db(tt1_ref[...], ee2_ref[...], te12_ref[...])  # (s1, e2)
        d21 = si_sdr_db(tt2_ref[...], ee1_ref[...], te21_ref[...])  # (s2, e1)
        d22 = si_sdr_db(tt2_ref[...], ee2_ref[...], te22_ref[...])  # (s2, e2)

        perm_a = (d11 + d22) * 0.5
        perm_b = (d12 + d21) * 0.5
        per_item = jnp.maximum(perm_a, perm_b)       # (B, 1)
        loss_ref[...] = (-jnp.mean(per_item)).reshape(1, 1)


def _choose_tile_t(B, T, vmem_budget_bytes=8 << 20, max_tile=32 * 1024):
    """Largest 128-multiple of lanes within the double-buffered VMEM budget."""
    # Per grid step: 4 inputs x 2 pipeline buffers x B x tile_T x 4 bytes.
    lanes = vmem_budget_bytes // (4 * 2 * B * 4)
    lanes = max(128, (lanes // 128) * 128)
    lanes = min(lanes, max_tile)
    if T <= lanes:
        return T        # single grid step; block == full dims is always legal
    return lanes        # ragged last tile (if any) is handled by the mask


def si_sdr_loss(s1_audio, s2_audio, s1_estimated, s2_estimated, *, tile_t=None):
    """Pallas-backed SI_SDR_LOSS.forward. Inputs: (B, T). Returns {'loss': scalar}."""
    assert s1_audio.shape == s2_audio.shape == s1_estimated.shape == s2_estimated.shape
    assert s1_audio.ndim == 2
    B, T = s1_audio.shape

    if tile_t is None:
        tile_t = _choose_tile_t(B, T)
    else:
        tile_t = min(int(tile_t), T)
        if tile_t < T:
            assert tile_t % 128 == 0, "explicit tile_t must be a multiple of 128"

    grid = (pl.cdiv(T, tile_t),)
    needs_mask = (T % tile_t) != 0

    kernel = functools.partial(
        _si_sdr_loss_kernel, tile_t=tile_t, total_t=T, needs_mask=needs_mask)

    in_spec = pl.BlockSpec((B, tile_t), lambda k: (0, k))
    out = pl.pallas_call(
        kernel,
        out_shape=jax.ShapeDtypeStruct((1, 1), jnp.float32),
        grid=grid,
        in_specs=[in_spec, in_spec, in_spec, in_spec],
        out_specs=pl.BlockSpec((1, 1), lambda k: (0, 0)),
        scratch_shapes=[pltpu.VMEM((B, 1), jnp.float32)] * 8,
        compiler_params=pltpu.CompilerParams(
            dimension_semantics=("arbitrary",),
            vmem_limit_bytes=32 * 1024 * 1024,
        ),
    )(s1_audio, s2_audio, s1_estimated, s2_estimated)
    return {"loss": out[0, 0]}


def _reference(s1, s2, e1, e2):
    """Plain-JAX reference for sanity checking."""
    def sisdr(t, e):
        a = jnp.sum(t * e, -1, keepdims=True) / (jnp.sum(t * t, -1, keepdims=True) + _EPS)
        proj = a * t
        noise = e - proj
        r = jnp.sum(proj * proj, -1) / (jnp.sum(noise * noise, -1) + _EPS) + _EPS
        return 10.0 * jnp.log10(r)
    pa = (sisdr(s1, e1) + sisdr(s2, e2)) / 2.0
    pb = (sisdr(s1, e2) + sisdr(s2, e1)) / 2.0
    return -jnp.mean(jnp.maximum(pa, pb))


if __name__ == "__main__":
    key = jax.random.PRNGKey(0)
    # (a) small toy shape          -> single grid step (auto tile),
    # (b) divisible multi-step     -> exercises tiled accumulation (grid > 1),
    # (c) ragged T with forced tile-> exercises the masked last-tile path,
    # (d) realistic audio length   -> auto tiling at scale.
    cases = [
        ((4, 1024), None),
        ((4, 8192), 2048),
        ((2, 1000), 256),
        ((4, 32 * 1024), None),
    ]
    for (B, T), tile in cases:
        key, k1, k2, k3, k4 = jax.random.split(key, 5)
        s1_audio = jax.random.normal(k1, (B, T), dtype=jnp.float32)
        s2_audio = jax.random.normal(k2, (B, T), dtype=jnp.float32)
        # estimates = noisy mixtures of the sources (realistic separator output)
        s1_estimated = (0.8 * s1_audio + 0.2 * s2_audio
                        + 0.1 * jax.random.normal(k3, (B, T), jnp.float32))
        s2_estimated = (0.2 * s1_audio + 0.8 * s2_audio
                        + 0.1 * jax.random.normal(k4, (B, T), jnp.float32))

        out = si_sdr_loss(s1_audio, s2_audio, s1_estimated, s2_estimated, tile_t=tile)
        loss = jax.block_until_ready(out["loss"])
        ref = _reference(s1_audio, s2_audio, s1_estimated, s2_estimated)
        assert jnp.allclose(loss, ref, rtol=1e-4, atol=1e-4), ((B, T), tile, loss, ref)

    print("KERNEL_OK")
</pallas_src>

<mosaic_0001>
module attributes {stable_mosaic.version = 11 : i64} {
  func.func @_si_sdr_loss_kernel(%arg0: i32, %arg1: memref<4x1024xf32, #tpu.memory_space<vmem>>, %arg2: memref<4x1024xf32, #tpu.memory_space<vmem>>, %arg3: memref<4x1024xf32, #tpu.memory_space<vmem>>, %arg4: memref<4x1024xf32, #tpu.memory_space<vmem>>, %arg5: memref<1x1xf32, #tpu.memory_space<vmem>>, %arg6: memref<4x1xf32, #tpu.memory_space<vmem>>, %arg7: memref<4x1xf32, #tpu.memory_space<vmem>>, %arg8: memref<4x1xf32, #tpu.memory_space<vmem>>, %arg9: memref<4x1xf32, #tpu.memory_space<vmem>>, %arg10: memref<4x1xf32, #tpu.memory_space<vmem>>, %arg11: memref<4x1xf32, #tpu.memory_space<vmem>>, %arg12: memref<4x1xf32, #tpu.memory_space<vmem>>, %arg13: memref<4x1xf32, #tpu.memory_space<vmem>>) attributes {dimension_semantics = [#tpu.dimension_semantics<arbitrary>], iteration_bounds = array<i64: 1>, scalar_prefetch = 0 : i64, scratch_operands = 8 : i64, tpu.core_type = #tpu.core_type<tc>, window_params = [{transform_indices = @transform_0, window_bounds = array<i64: 4, 1024>}, {transform_indices = @transform_1, window_bounds = array<i64: 4, 1024>}, {transform_indices = @transform_2, window_bounds = array<i64: 4, 1024>}, {transform_indices = @transform_3, window_bounds = array<i64: 4, 1024>}, {pipeline_mode = #tpu.pipeline_mode<synchronous>, transform_indices = @transform_4, window_bounds = array<i64: 1, 1>}]} {
    %c0_i32 = arith.constant 0 : i32
    %0 = arith.cmpi eq, %arg0, %c0_i32 : i32
    %1 = arith.extui %0 : i1 to i32
    %c0_i32_0 = arith.constant 0 : i32
    %2 = arith.cmpi ne, %1, %c0_i32_0 : i32
    scf.if %2 {
      %cst_49 = arith.constant 0.000000e+00 : f32
      %58 = vector.broadcast %cst_49 : f32 to vector<4x1xf32>
      %c0_50 = arith.constant 0 : index
      %c0_51 = arith.constant 0 : index
      %59 = vector.load %arg6[%c0_50, %c0_51] : memref<4x1xf32, #tpu.memory_space<vmem>>, vector<4x1xf32>
      tpu.vector_store %arg6[%c0_50, %c0_51], %58 {strides = array<i32>} : memref<4x1xf32, #tpu.memory_space<vmem>>, vector<4x1xf32>,
      %cst_52 = arith.constant 0.000000e+00 : f32
      %60 = vector.broadcast %cst_52 : f32 to vector<4x1xf32>
      %c0_53 = arith.constant 0 : index
      %c0_54 = arith.constant 0 : index
      %61 = vector.load %arg7[%c0_53, %c0_54] : memref<4x1xf32, #tpu.memory_space<vmem>>, vector<4x1xf32>
      tpu.vector_store %arg7[%c0_53, %c0_54], %60 {strides = array<i32>} : memref<4x1xf32, #tpu.memory_space<vmem>>, vector<4x1xf32>,
      %cst_55 = arith.constant 0.000000e+00 : f32
      %62 = vector.broadcast %cst_55 : f32 to vector<4x1xf32>
      %c0_56 = arith.constant 0 : index
      %c0_57 = arith.constant 0 : index
      %63 = vector.load %arg8[%c0_56, %c0_57] : memref<4x1xf32, #tpu.memory_space<vmem>>, vector<4x1xf32>
      tpu.vector_store %arg8[%c0_56, %c0_57], %62 {strides = array<i32>} : memref<4x1xf32, #tpu.memory_space<vmem>>, vector<4x1xf32>,
      %cst_58 = arith.constant 0.000000e+00 : f32
      %64 = vector.broadcast %cst_58 : f32 to vector<4x1xf32>
      %c0_59 = arith.constant 0 : index
      %c0_60 = arith.constant 0 : index
      %65 = vector.load %arg9[%c0_59, %c0_60] : memref<4x1xf32, #tpu.memory_space<vmem>>, vector<4x1xf32>
      tpu.vector_store %arg9[%c0_59, %c0_60], %64 {strides = array<i32>} : memref<4x1xf32, #tpu.memory_space<vmem>>, vector<4x1xf32>,
      %cst_61 = arith.constant 0.000000e+00 : f32
      %66 = vector.broadcast %cst_61 : f32 to vector<4x1xf32>
      %c0_62 = arith.constant 0 : index
      %c0_63 = arith.constant 0 : index
      %67 = vector.load %arg10[%c0_62, %c0_63] : memref<4x1xf32, #tpu.memory_space<vmem>>, vector<4x1xf32>
      tpu.vector_store %arg10[%c0_62, %c0_63], %66 {strides = array<i32>} : memref<4x1xf32, #tpu.memory_space<vmem>>, vector<4x1xf32>,
      %cst_64 = arith.constant 0.000000e+00 : f32
      %68 = vector.broadcast %cst_64 : f32 to vector<4x1xf32>
      %c0_65 = arith.constant 0 : index
      %c0_66 = arith.constant 0 : index
      %69 = vector.load %arg11[%c0_65, %c0_66] : memref<4x1xf32, #tpu.memory_space<vmem>>, vector<4x1xf32>
      tpu.vector_store %arg11[%c0_65, %c0_66], %68 {strides = array<i32>} : memref<4x1xf32, #tpu.memory_space<vmem>>, vector<4x1xf32>,
      %cst_67 = arith.constant 0.000000e+00 : f32
      %70 = vector.broadcast %cst_67 : f32 to vector<4x1xf32>
      %c0_68 = arith.constant 0 : index
      %c0_69 = arith.constant 0 : index
      %71 = vector.load %arg12[%c0_68, %c0_69] : memref<4x1xf32, #tpu.memory_space<vmem>>, vector<4x1xf32>
      tpu.vector_store %arg12[%c0_68, %c0_69], %70 {strides = array<i32>} : memref<4x1xf32, #tpu.memory_space<vmem>>, vector<4x1xf32>,
      %cst_70 = arith.constant 0.000000e+00 : f32
      %72 = vector.broadcast %cst_70 : f32 to vector<4x1xf32>
      %c0_71 = arith.constant 0 : index
      %c0_72 = arith.constant 0 : index
      %73 = vector.load %arg13[%c0_71, %c0_72] : memref<4x1xf32, #tpu.memory_space<vmem>>, vector<4x1xf32>
      tpu.vector_store %arg13[%c0_71, %c0_72], %72 {strides = array<i32>} : memref<4x1xf32, #tpu.memory_space<vmem>>, vector<4x1xf32>,
    } else {
    }
    %c0 = arith.constant 0 : index
    %c0_1 = arith.constant 0 : index
    %3 = vector.load %arg1[%c0, %c0_1] : memref<4x1024xf32, #tpu.memory_space<vmem>>, vector<4x1024xf32>
    %c0_2 = arith.constant 0 : index
    %c0_3 = arith.constant 0 : index
    %4 = vector.load %arg2[%c0_2, %c0_3] : memref<4x1024xf32, #tpu.memory_space<vmem>>, vector<4x1024xf32>
    %c0_4 = arith.constant 0 : index
    %c0_5 = arith.constant 0 : index
    %5 = vector.load %arg3[%c0_4, %c0_5] : memref<4x1024xf32, #tpu.memory_space<vmem>>, vector<4x1024xf32>
    %c0_6 = arith.constant 0 : index
    %c0_7 = arith.constant 0 : index
    %6 = vector.load %arg4[%c0_6, %c0_7] : memref<4x1024xf32, #tpu.memory_space<vmem>>, vector<4x1024xf32>
    %c0_8 = arith.constant 0 : index
    %c0_9 = arith.constant 0 : index
    %7 = vector.load %arg6[%c0_8, %c0_9] : memref<4x1xf32, #tpu.memory_space<vmem>>, vector<4x1xf32>
    %8 = arith.mulf %3, %3 : vector<4x1024xf32>
    %cst = arith.constant dense<0.000000e+00> : vector<4xf32>
    %9 = vector.multi_reduction <add>, %8, %cst [1] : vector<4x1024xf32> to vector<4xf32>
    %10 = vector.shape_cast %9 : vector<4xf32> to vector<4x1xf32>
    %11 = arith.addf %7, %10 : vector<4x1xf32>
    %c0_10 = arith.constant 0 : index
    %c0_11 = arith.constant 0 : index
    %12 = vector.load %arg6[%c0_10, %c0_11] : memref<4x1xf32, #tpu.memory_space<vmem>>, vector<4x1xf32>
    tpu.vector_store %arg6[%c0_10, %c0_11], %11 {strides = array<i32>} : memref<4x1xf32, #tpu.memory_space<vmem>>, vector<4x1xf32>,
    %c0_12 = arith.constant 0 : index
    %c0_13 = arith.constant 0 : index
    %13 = vector.load %arg7[%c0_12, %c0_13] : memref<4x1xf32, #tpu.memory_space<vmem>>, vector<4x1xf32>
    %14 = arith.mulf %4, %4 : vector<4x1024xf32>
    %cst_14 = arith.constant dense<0.000000e+00> : vector<4xf32>
    %15 = vector.multi_reduction <add>, %14, %cst_14 [1] : vector<4x1024xf32> to vector<4xf32>
    %16 = vector.shape_cast %15 : vector<4xf32> to vector<4x1xf32>
    %17 = arith.addf %13, %16 : vector<4x1xf32>
    %c0_15 = arith.constant 0 : index
    %c0_16 = arith.constant 0 : index
    %18 = vector.load %arg7[%c0_15, %c0_16] : memref<4x1xf32, #tpu.memory_space<vmem>>, vector<4x1xf32>
    tpu.vector_store %arg7[%c0_15, %c0_16], %17 {strides = array<i32>} : memref<4x1xf32, #tpu.memory_space<vmem>>, vector<4x1xf32>,
    %c0_17 = arith.constant 0 : index
    %c0_18 = arith.constant 0 : index
    %19 = vector.load %arg8[%c0_17, %c0_18] : memref<4x1xf32, #tpu.memory_space<vmem>>, vector<4x1xf32>
    %20 = arith.mulf %5, %5 : vector<4x1024xf32>
    %cst_19 = arith.constant dense<0.000000e+00> : vector<4xf32>
    %21 = vector.multi_reduction <add>, %20, %cst_19 [1] : vector<4x1024xf32> to vector<4xf32>
    %22 = vector.shape_cast %21 : vector<4xf32> to vector<4x1xf32>
    %23 = arith.addf %19, %22 : vector<4x1xf32>
    %c0_20 = arith.constant 0 : index
    %c0_21 = arith.constant 0 : index
    %24 = vector.load %arg8[%c0_20, %c0_21] : memref<4x1xf32, #tpu.memory_space<vmem>>, vector<4x1xf32>
    tpu.vector_store %arg8[%c0_20, %c0_21], %23 {strides = array<i32>} : memref<4x1xf32, #tpu.memory_space<vmem>>, vector<4x1xf32>,
    %c0_22 = arith.constant 0 : index
    %c0_23 = arith.constant 0 : index
    %25 = vector.load %arg9[%c0_22, %c0_23] : memref<4x1xf32, #tpu.memory_space<vmem>>, vector<4x1xf32>
    %26 = arith.mulf %6, %6 : vector<4x1024xf32>
    %cst_24 = arith.constant dense<0.000000e+00> : vector<4xf32>
    %27 = vector.multi_reduction <add>, %26, %cst_24 [1] : vector<4x1024xf32> to vector<4xf32>
    %28 = vector.shape_cast %27 : vector<4xf32> to vector<4x1xf32>
    %29 = arith.addf %25, %28 : vector<4x1xf32>
    %c0_25 = arith.constant 0 : index
    %c0_26 = arith.constant 0 : index
    %30 = vector.load %arg9[%c0_25, %c0_26] : memref<4x1xf32, #tpu.memory_space<vmem>>, vector<4x1xf32>
    tpu.vector_store %arg9[%c0_25, %c0_26], %29 {strides = array<i32>} : memref<4x1xf32, #tpu.memory_space<vmem>>, vector<4x1xf32>,
    %c0_27 = arith.constant 0 : index
    %c0_28 = arith.constant 0 : index
    %31 = vector.load %arg10[%c0_27, %c0_28] : memref<4x1xf32, #tpu.memory_space<vmem>>, vector<4x1xf32>
    %32 = arith.mulf %3, %5 : vector<4x1024xf32>
    %cst_29 = arith.constant dense<0.000000e+00> : vector<4xf32>
    %33 = vector.multi_reduction <add>, %32, %cst_29 [1] : vector<4x1024xf32> to vector<4xf32>
    %34 = vector.shape_cast %33 : vector<4xf32> to vector<4x1xf32>
    %35 = arith.addf %31, %34 : vector<4x1xf32>
    %c0_30 = arith.constant 0 : index
    %c0_31 = arith.constant 0 : index
    %36 = vector.load %arg10[%c0_30, %c0_31] : memref<4x1xf32, #tpu.memory_space<vmem>>, vector<4x1xf32>
    tpu.vector_store %arg10[%c0_30, %c0_31], %35 {strides = array<i32>} : memref<4x1xf32, #tpu.memory_space<vmem>>, vector<4x1xf32>,
    %c0_32 = arith.constant 0 : index
    %c0_33 = arith.constant 0 : index
    %37 = vector.load %arg11[%c0_32, %c0_33] : memref<4x1xf32, #tpu.memory_space<vmem>>, vector<4x1xf32>
    %38 = arith.mulf %3, %6 : vector<4x1024xf32>
    %cst_34 = arith.constant dense<0.000000e+00> : vector<4xf32>
    %39 = vector.multi_reduction <add>, %38, %cst_34 [1] : vector<4x1024xf32> to vector<4xf32>
    %40 = vector.shape_cast %39 : vector<4xf32> to vector<4x1xf32>
    %41 = arith.addf %37, %40 : vector<4x1xf32>
    %c0_35 = arith.constant 0 : index
    %c0_36 = arith.constant 0 : index
    %42 = vector.load %arg11[%c0_35, %c0_36] : memref<4x1xf32, #tpu.memory_space<vmem>>, vector<4x1xf32>
    tpu.vector_store %arg11[%c0_35, %c0_36], %41 {strides = array<i32>} : memref<4x1xf32, #tpu.memory_space<vmem>>, vector<4x1xf32>,
    %c0_37 = arith.constant 0 : index
    %c0_38 = arith.constant 0 : index
    %43 = vector.load %arg12[%c0_37, %c0_38] : memref<4x1xf32, #tpu.memory_space<vmem>>, vector<4x1xf32>
    %44 = arith.mulf %4, %5 : vector<4x1024xf32>
    %cst_39 = arith.constant dense<0.000000e+00> : vector<4xf32>
    %45 = vector.multi_reduction <add>, %44, %cst_39 [1] : vector<4x1024xf32> to vector<4xf32>
    %46 = vector.shape_cast %45 : vector<4xf32> to vector<4x1xf32>
    %47 = arith.addf %43, %46 : vector<4x1xf32>
    %c0_40 = arith.constant 0 : index
    %c0_41 = arith.constant 0 : index
    %48 = vector.load %arg12[%c0_40, %c0_41] : memref<4x1xf32, #tpu.memory_space<vmem>>, vector<4x1xf32>
    tpu.vector_store %arg12[%c0_40, %c0_41], %47 {strides = array<i32>} : memref<4x1xf32, #tpu.memory_space<vmem>>, vector<4x1xf32>,
    %c0_42 = arith.constant 0 : index
    %c0_43 = arith.constant 0 : index
    %49 = vector.load %arg13[%c0_42, %c0_43] : memref<4x1xf32, #tpu.memory_space<vmem>>, vector<4x1xf32>
    %50 = arith.mulf %4, %6 : vector<4x1024xf32>
    %cst_44 = arith.constant dense<0.000000e+00> : vector<4xf32>
    %51 = vector.multi_reduction <add>, %50, %cst_44 [1] : vector<4x1024xf32> to vector<4xf32>
    %52 = vector.shape_cast %51 : vector<4xf32> to vector<4x1xf32>
    %53 = arith.addf %49, %52 : vector<4x1xf32>
    %c0_45 = arith.constant 0 : index
    %c0_46 = arith.constant 0 : index
    %54 = vector.load %arg13[%c0_45, %c0_46] : memref<4x1xf32, #tpu.memory_space<vmem>>, vector<4x1xf32>
    tpu.vector_store %arg13[%c0_45, %c0_46], %53 {strides = array<i32>} : memref<4x1xf32, #tpu.memory_space<vmem>>, vector<4x1xf32>,
    %c0_i32_47 = arith.constant 0 : i32
    %55 = arith.cmpi eq, %arg0, %c0_i32_47 : i32
    %56 = arith.extui %55 : i1 to i32
    %c0_i32_48 = arith.constant 0 : i32
    %57 = arith.cmpi ne, %56, %c0_i32_48 : i32
    scf.if %57 {
      %c0_49 = arith.constant 0 : index
      %c0_50 = arith.constant 0 : index
      %58 = vector.load %arg6[%c0_49, %c0_50] : memref<4x1xf32, #tpu.memory_space<vmem>>, vector<4x1xf32>
      %c0_51 = arith.constant 0 : index
      %c0_52 = arith.constant 0 : index
      %59 = vector.load %arg8[%c0_51, %c0_52] : memref<4x1xf32, #tpu.memory_space<vmem>>, vector<4x1xf32>
      %c0_53 = arith.constant 0 : index
      %c0_54 = arith.constant 0 : index
      %60 = vector.load %arg10[%c0_53, %c0_54] : memref<4x1xf32, #tpu.memory_space<vmem>>, vector<4x1xf32>
      %cst_55 = arith.constant 9.99999993E-9 : f32
      %61 = vector.broadcast %cst_55 : f32 to vector<4x1xf32>
      %62 = arith.addf %58, %61 : vector<4x1xf32>
      %63 = arith.divf %60, %62 : vector<4x1xf32>
      %64 = arith.mulf %63, %63 : vector<4x1xf32>
      %65 = arith.mulf %64, %58 : vector<4x1xf32>
      %cst_56 = arith.constant 2.000000e+00 : f32
      %66 = vector.broadcast %cst_56 : f32 to vector<4x1xf32>
      %67 = arith.mulf %66, %63 : vector<4x1xf32>
      %68 = arith.mulf %67, %60 : vector<4x1xf32>
      %69 = arith.subf %59, %68 : vector<4x1xf32>
      %70 = arith.addf %69, %65 : vector<4x1xf32>
      %cst_57 = arith.constant 9.99999993E-9 : f32
      %71 = vector.broadcast %cst_57 : f32 to vector<4x1xf32>
      %72 = arith.addf %70, %71 : vector<4x1xf32>
      %73 = arith.divf %65, %72 : vector<4x1xf32>
      %cst_58 = arith.constant 9.99999993E-9 : f32
      %74 = vector.broadcast %cst_58 : f32 to vector<4x1xf32>
      %75 = arith.addf %73, %74 : vector<4x1xf32>
      %76 = math.log %75 : vector<4x1xf32>
      %cst_59 = arith.constant 2.30258512 : f32
      %77 = vector.broadcast %cst_59 : f32 to vector<4x1xf32>
      %78 = arith.divf %76, %77 : vector<4x1xf32>
      %cst_60 = arith.constant 1.000000e+01 : f32
      %79 = vector.broadcast %cst_60 : f32 to vector<4x1xf32>
      %80 = arith.mulf %79, %78 : vector<4x1xf32>
      %c0_61 = arith.constant 0 : index
      %c0_62 = arith.constant 0 : index
      %81 = vector.load %arg6[%c0_61, %c0_62] : memref<4x1xf32, #tpu.memory_space<vmem>>, vector<4x1xf32>
      %c0_63 = arith.constant 0 : index
      %c0_64 = arith.constant 0 : index
      %82 = vector.load %arg9[%c0_63, %c0_64] : memref<4x1xf32, #tpu.memory_space<vmem>>, vector<4x1xf32>
      %c0_65 = arith.constant 0 : index
      %c0_66 = arith.constant 0 : index
      %83 = vector.load %arg11[%c0_65, %c0_66] : memref<4x1xf32, #tpu.memory_space<vmem>>, vector<4x1xf32>
      %cst_67 = arith.constant 9.99999993E-9 : f32
      %84 = vector.broadcast %cst_67 : f32 to vector<4x1xf32>
      %85 = arith.addf %81, %84 : vector<4x1xf32>
      %86 = arith.divf %83, %85 : vector<4x1xf32>
      %87 = arith.mulf %86, %86 : vector<4x1xf32>
      %88 = arith.mulf %87, %81 : vector<4x1xf32>
      %cst_68 = arith.constant 2.000000e+00 : f32
      %89 = vector.broadcast %cst_68 : f32 to vector<4x1xf32>
      %90 = arith.mulf %89, %86 : vector<4x1xf32>
      %91 = arith.mulf %90, %83 : vector<4x1xf32>
      %92 = arith.subf %82, %91 : vector<4x1xf32>
      %93 = arith.addf %92, %88 : vector<4x1xf32>
      %cst_69 = arith.constant 9.99999993E-9 : f32
      %94 = vector.broadcast %cst_69 : f32 to vector<4x1xf32>
      %95 = arith.addf %93, %94 : vector<4x1xf32>
      %96 = arith.divf %88, %95 : vector<4x1xf32>
      %cst_70 = arith.constant 9.99999993E-9 : f32
      %97 = vector.broadcast %cst_70 : f32 to vector<4x1xf32>
      %98 = arith.addf %96, %97 : vector<4x1xf32>
      %99 = math.log %98 : vector<4x1xf32>
      %cst_71 = arith.constant 2.30258512 : f32
      %100 = vector.broadcast %cst_71 : f32 to vector<4x1xf32>
      %101 = arith.divf %99, %100 : vector<4x1xf32>
      %cst_72 = arith.constant 1.000000e+01 : f32
      %102 = vector.broadcast %cst_72 : f32 to vector<4x1xf32>
      %103 = arith.mulf %102, %101 : vector<4x1xf32>
      %c0_73 = arith.constant 0 : index
      %c0_74 = arith.constant 0 : index
      %104 = vector.load %arg7[%c0_73, %c0_74] : memref<4x1xf32, #tpu.memory_space<vmem>>, vector<4x1xf32>
      %c0_75 = arith.constant 0 : index
      %c0_76 = arith.constant 0 : index
      %105 = vector.load %arg8[%c0_75, %c0_76] : memref<4x1xf32, #tpu.memory_space<vmem>>, vector<4x1xf32>
      %c0_77 = arith.constant 0 : index
      %c0_78 = arith.constant 0 : index
      %106 = vector.load %arg12[%c0_77, %c0_78] : memref<4x1xf32, #tpu.memory_space<vmem>>, vector<4x1xf32>
      %cst_79 = arith.constant 9.99999993E-9 : f32
      %107 = vector.broadcast %cst_79 : f32 to vector<4x1xf32>
      %108 = arith.addf %104, %107 : vector<4x1xf32>
      %109 = arith.divf %106, %108 : vector<4x1xf32>
      %110 = arith.mulf %109, %109 : vector<4x1xf32>
      %111 = arith.mulf %110, %104 : vector<4x1xf32>
      %cst_80 = arith.constant 2.000000e+00 : f32
      %112 = vector.broadcast %cst_80 : f32 to vector<4x1xf32>
      %113 = arith.mulf %112, %109 : vector<4x1xf32>
      %114 = arith.mulf %113, %106 : vector<4x1xf32>
      %115 = arith.subf %105, %114 : vector<4x1xf32>
      %116 = arith.addf %115, %111 : vector<4x1xf32>
      %cst_81 = arith.constant 9.99999993E-9 : f32
      %117 = vector.broadcast %cst_81 : f32 to vector<4x1xf32>
      %118 = arith.addf %116, %117 : vector<4x1xf32>
      %119 = arith.divf %111, %118 : vector<4x1xf32>
      %cst_82 = arith.constant 9.99999993E-9 : f32
      %120 = vector.broadcast %cst_82 : f32 to vector<4x1xf32>
      %121 = arith.addf %119, %120 : vector<4x1xf32>
      %122 = math.log %121 : vector<4x1xf32>
      %cst_83 = arith.constant 2.30258512 : f32
      %123 = vector.broadcast %cst_83 : f32 to vector<4x1xf32>
      %124 = arith.divf %122, %123 : vector<4x1xf32>
      %cst_84 = arith.constant 1.000000e+01 : f32
      %125 = vector.broadcast %cst_84 : f32 to vector<4x1xf32>
      %126 = arith.mulf %125, %124 : vector<4x1xf32>
      %c0_85 = arith.constant 0 : index
      %c0_86 = arith.constant 0 : index
      %127 = vector.load %arg7[%c0_85, %c0_86] : memref<4x1xf32, #tpu.memory_space<vmem>>, vector<4x1xf32>
      %c0_87 = arith.constant 0 : index
      %c0_88 = arith.constant 0 : index
      %128 = vector.load %arg9[%c0_87, %c0_88] : memref<4x1xf32, #tpu.memory_space<vmem>>, vector<4x1xf32>
      %c0_89 = arith.constant 0 : index
      %c0_90 = arith.constant 0 : index
      %129 = vector.load %arg13[%c0_89, %c0_90] : memref<4x1xf32, #tpu.memory_space<vmem>>, vector<4x1xf32>
      %cst_91 = arith.constant 9.99999993E-9 : f32
      %130 = vector.broadcast %cst_91 : f32 to vector<4x1xf32>
      %131 = arith.addf %127, %130 : vector<4x1xf32>
      %132 = arith.divf %129, %131 : vector<4x1xf32>
      %133 = arith.mulf %132, %132 : vector<4x1xf32>
      %134 = arith.mulf %133, %127 : vector<4x1xf32>
      %cst_92 = arith.constant 2.000000e+00 : f32
      %135 = vector.broadcast %cst_92 : f32 to vector<4x1xf32>
      %136 = arith.mulf %135, %132 : vector<4x1xf32>
      %137 = arith.mulf %136, %129 : vector<4x1xf32>
      %138 = arith.subf %128, %137 : vector<4x1xf32>
      %139 = arith.addf %138, %134 : vector<4x1xf32>
      %cst_93 = arith.constant 9.99999993E-9 : f32
      %140 = vector.broadcast %cst_93 : f32 to vector<4x1xf32>
      %141 = arith.addf %139, %140 : vector<4x1xf32>
      %142 = arith.divf %134, %141 : vector<4x1xf32>
      %cst_94 = arith.constant 9.99999993E-9 : f32
      %143 = vector.broadcast %cst_94 : f32 to vector<4x1xf32>
      %144 = arith.addf %142, %143 : vector<4x1xf32>
      %145 = math.log %144 : vector<4x1xf32>
      %cst_95 = arith.constant 2.30258512 : f32
      %146 = vector.broadcast %cst_95 : f32 to vector<4x1xf32>
      %147 = arith.divf %145, %146 : vector<4x1xf32>
      %cst_96 = arith.constant 1.000000e+01 : f32
      %148 = vector.broadcast %cst_96 : f32 to vector<4x1xf32>
      %149 = arith.mulf %148, %147 : vector<4x1xf32>
      %150 = arith.addf %80, %149 : vector<4x1xf32>
      %cst_97 = arith.constant 5.000000e-01 : f32
      %151 = vector.broadcast %cst_97 : f32 to vector<4x1xf32>
      %152 = arith.mulf %150, %151 : vector<4x1xf32>
      %153 = arith.addf %103, %126 : vector<4x1xf32>
      %cst_98 = arith.constant 5.000000e-01 : f32
      %154 = vector.broadcast %cst_98 : f32 to vector<4x1xf32>
      %155 = arith.mulf %153, %154 : vector<4x1xf32>
      %156 = arith.maximumf %152, %155 : vector<4x1xf32>
      %157 = vector.shape_cast %156 : vector<4x1xf32> to vector<1x4x1xf32>
      %cst_99 = arith.constant dense<0.000000e+00> : vector<1xf32>
      %158 = vector.multi_reduction <add>, %157, %cst_99 [1, 2] : vector<1x4x1xf32> to vector<1xf32>
      %159 = vector.shape_cast %158 : vector<1xf32> to vector<1x1x1xf32>
      %160 = vector.extract %159[0, 0, 0] : f32 from vector<1x1x1xf32>
      %cst_100 = arith.constant 4.000000e+00 : f32
      %161 = arith.divf %160, %cst_100 : f32
      %cst_101 = arith.constant 0.000000e+00 : f32
      %162 = arith.subf %cst_101, %161 : f32
      %163 = vector.broadcast %162 : f32 to vector<1x1xf32>
      %c0_102 = arith.constant 0 : index
      %c0_103 = arith.constant 0 : index
      %164 = vector.load %arg5[%c0_102, %c0_103] : memref<1x1xf32, #tpu.memory_space<vmem>>, vector<1x1xf32>
      tpu.vector_store %arg5[%c0_102, %c0_103], %163 {strides = array<i32>} : memref<1x1xf32, #tpu.memory_space<vmem>>, vector<1x1xf32>,
    } else {
    }
    return
  }
  func.func @transform_0(%arg0: i32) -> (i32, i32) {
    %c0_i32 = arith.constant 0 : i32
    %c0_i32_0 = arith.constant 0 : i32
    return %c0_i32, %arg0 : i32, i32
  }
  func.func @transform_1(%arg0: i32) -> (i32, i32) {
    %c0_i32 = arith.constant 0 : i32
    %c0_i32_0 = arith.constant 0 : i32
    return %c0_i32, %arg0 : i32, i32
  }
  func.func @transform_2(%arg0: i32) -> (i32, i32) {
    %c0_i32 = arith.constant 0 : i32
    %c0_i32_0 = arith.constant 0 : i32
    return %c0_i32, %arg0 : i32, i32
  }
  func.func @transform_3(%arg0: i32) -> (i32, i32) {
    %c0_i32 = arith.constant 0 : i32
    %c0_i32_0 = arith.constant 0 : i32
    return %c0_i32, %arg0 : i32, i32
  }
  func.func @transform_4(%arg0: i32) -> (i32, i32) {
    %c0_i32 = arith.constant 0 : i32
    %c0_i32_0 = arith.constant 0 : i32
    %c0_i32_1 = arith.constant 0 : i32
    return %c0_i32, %c0_i32_0 : i32, i32
  }
}

</mosaic_0001>

<llo_original>
// kernel: tpu_custom_call.1
$region0: #{tpu_custom_call.1}
  #allocation0 [shape = 'u32[]', space=smem, size = 0x4, offset = 0x4, fixed_abs, tag = 'smem constant byte address 0x4 - core index']
  #allocation1 [shape = 'u32[144,128]{1,0:T(1,128)}', space=vmem, size = 0x12000, scoped, tag = 'internal scratch']
  #allocation2 [shape = 'f32[4,1]{1,0:T(4,128)}', space=vmem, size = 0x800, scoped, tag = 'scratch operand']
  #allocation3 [shape = 'f32[4,1]{1,0:T(4,128)}', space=vmem, size = 0x800, scoped, tag = 'scratch operand']
  #allocation4 [shape = 'f32[4,1]{1,0:T(4,128)}', space=vmem, size = 0x800, scoped, tag = 'scratch operand']
  #allocation5 [shape = 'f32[4,1]{1,0:T(4,128)}', space=vmem, size = 0x800, scoped, tag = 'scratch operand']
  #allocation6 [shape = 'f32[4,1]{1,0:T(4,128)}', space=vmem, size = 0x800, scoped, tag = 'scratch operand']
  #allocation7 [shape = 'f32[4,1]{1,0:T(4,128)}', space=vmem, size = 0x800, scoped, tag = 'scratch operand']
  #allocation8 [shape = 'f32[4,1]{1,0:T(4,128)}', space=vmem, size = 0x800, scoped, tag = 'scratch operand']
  #allocation9 [shape = 'f32[4,1]{1,0:T(4,128)}', space=vmem, size = 0x800, scoped, tag = 'scratch operand']
  %s0 = inlined_call_operand.hbm [shape: f32[4,1024], index: 0, kind: input, shape index: {}]
  %s1 = inlined_call_operand.hbm [shape: f32[4,1024], index: 1, kind: input, shape index: {}]
  %s2 = inlined_call_operand.hbm [shape: f32[4,1024], index: 2, kind: input, shape index: {}]
  %s3 = inlined_call_operand.hbm [shape: f32[4,1024], index: 3, kind: input, shape index: {}]
  %s4 = inlined_call_operand.hbm [shape: f32[1,1], index: 4, kind: output, shape index: {}]
  %s5 = sld [smem:[#allocation0]]
  $region50: #{tpu_custom_call.1} parent=0
    _
  %s7 = ssub.s32 1, %s5
  %s8 = scalar_select 0, %s7, %s5
  $region1: #{tpu_custom_call.1} parent=0
    #allocation10 [shape = 'u8[16384]{0}', space=vmem, size = 0x4000, scoped, tag = 'input window, operand 0, single buffered']
    #allocation11 [shape = 's32[1]{0}', space=sflag, size = 0x4, scoped, tag = 'scoped memory for tpu_custom_call.1']
    #allocation12 [shape = 's32[1]{0}', space=sflag, size = 0x4, scoped, tag = 'scoped memory for tpu_custom_call.1']
    #allocation13 [shape = 'u8[16384]{0}', space=vmem, size = 0x4000, scoped, tag = 'input window, operand 1, single buffered']
    #allocation14 [shape = 's32[1]{0}', space=sflag, size = 0x4, scoped, tag = 'scoped memory for tpu_custom_call.1']
    #allocation15 [shape = 'u8[16384]{0}', space=vmem, size = 0x4000, scoped, tag = 'input window, operand 2, single buffered']
    #allocation16 [shape = 'u8[16384]{0}', space=vmem, size = 0x4000, scoped, tag = 'input window, operand 3, single buffered']
    #allocation17 [shape = 's32[1]{0}', space=sflag, size = 0x4, scoped, tag = 'scoped memory for tpu_custom_call.1']
    #allocation18 [shape = 'u8[512]{0}', space=vmem, size = 0x400, scoped, tag = 'output window, operand 0, single buffered']
    %9 = vsyncpa [#allocation11], 0
    %10 = vsyncpa [#allocation14], 0
    %11 = vsyncpa [#allocation17], 0
    %12 = vsyncpa [#allocation12], 0
    // Predicated region
    $region2: #{tpu_custom_call.1} parent=1 // pred_check
      _
    $region3: #{tpu_custom_call.1} parent=1 // pred_check_branch
      %14 = sbr.rel (0) target = $region5
    $region4: #{tpu_custom_call.1} parent=1 // pred_region
      %s16 = ssub.s32 512, 512
      %17 = vsyncadd [#allocation11], %s16
      %s19 = sshll.u32 [#allocation10], 4
      %s20 = int_to_ptr.vmem [resolvable:$true] %s19
      %22 = dma.hbm_to_vmem [thread:$0]  %s0, 512, %s20, [#allocation11]
    $region5: #{tpu_custom_call.1} parent=1 // pred_fallthru
      _
    // Predicated region
    $region6: #{tpu_custom_call.1} parent=1 // pred_check
      _
    $region7: #{tpu_custom_call.1} parent=1 // pred_check_branch
      %24 = sbr.rel (0) target = $region9
    $region8: #{tpu_custom_call.1} parent=1 // pred_region
      %s26 = ssub.s32 512, 512
      %27 = vsyncadd [#allocation14], %s26
      %s29 = sshll.u32 [#allocation13], 4
      %s30 = int_to_ptr.vmem [resolvable:$true] %s29
      %32 = dma.hbm_to_vmem [thread:$0]  %s1, 512, %s30, [#allocation14]
    $region9: #{tpu_custom_call.1} parent=1 // pred_fallthru
      _
    // Predicated region
    $region10: #{tpu_custom_call.1} parent=1 // pred_check
      _
    $region11: #{tpu_custom_call.1} parent=1 // pred_check_branch
      %34 = sbr.rel (0) target = $region13
    $region12: #{tpu_custom_call.1} parent=1 // pred_region
      %s36 = ssub.s32 512, 512
      %37 = vsyncadd [#allocation14], %s36
      %s39 = sshll.u32 [#allocation15], 4
      %s40 = int_to_ptr.vmem [resolvable:$true] %s39
      %42 = dma.hbm_to_vmem [thread:$0]  %s2, 512, %s40, [#allocation14]
    $region13: #{tpu_custom_call.1} parent=1 // pred_fallthru
      _
    // Predicated region
    $region14: #{tpu_custom_call.1} parent=1 // pred_check
      _
    $region15: #{tpu_custom_call.1} parent=1 // pred_check_branch
      %44 = sbr.rel (0) target = $region17
    $region16: #{tpu_custom_call.1} parent=1 // pred_region
      %s46 = ssub.s32 512, 512
      %47 = vsyncadd [#allocation17], %s46
      %s49 = sshll.u32 [#allocation16], 4
      %s50 = int_to_ptr.vmem [resolvable:$true] %s49
      %52 = dma.hbm_to_vmem [thread:$0]  %s3, 512, %s50, [#allocation17]
    $region17: #{tpu_custom_call.1} parent=1 // pred_fallthru
      _
    // Predicated region
    $region18: #{tpu_custom_call.1} parent=1 // pred_check
      _
    $region19: #{tpu_custom_call.1} parent=1 // pred_check_branch
      %54 = sbr.rel (0) target = $region21
    $region20: #{tpu_custom_call.1} parent=1 // pred_region
      %55 = dma.done [#allocation11], 512
    $region21: #{tpu_custom_call.1} parent=1 // pred_fallthru
      _
    // Predicated region
    $region22: #{tpu_custom_call.1} parent=1 // pred_check
      _
    $region23: #{tpu_custom_call.1} parent=1 // pred_check_branch
      %57 = sbr.rel (0) target = $region25
    $region24: #{tpu_custom_call.1} parent=1 // pred_region
      %58 = dma.done [#allocation14], 512
    $region25: #{tpu_custom_call.1} parent=1 // pred_fallthru
      _
    // Predicated region
    $region26: #{tpu_custom_call.1} parent=1 // pred_check
      _
    $region27: #{tpu_custom_call.1} parent=1 // pred_check_branch
      %60 = sbr.rel (0) target = $region29
    $region28: #{tpu_custom_call.1} parent=1 // pred_region
      %61 = dma.done [#allocation14], 512
    $region29: #{tpu_custom_call.1} parent=1 // pred_fallthru
      _
    // Predicated region
    $region30: #{tpu_custom_call.1} parent=1 // pred_check
      _
    $region31: #{tpu_custom_call.1} parent=1 // pred_check_branch
      %63 = sbr.rel (0) target = $region33
    $region32: #{tpu_custom_call.1} parent=1 // pred_region
      %64 = dma.done [#allocation17], 512
    $region33: #{tpu_custom_call.1} parent=1 // pred_fallthru
      _
    %p65 = scmp.eq.s32.totalorder 0, 0
    // Predicated region
    $region34: #{tpu_custom_call.1} parent=1 // pred_check
      %p66 = pneg %p65
    $region35: #{tpu_custom_call.1} parent=1 // pred_check_branch
      %68 = sbr.rel (%p66) target = $region37
    $region36: #{tpu_custom_call.1} parent=1 // pred_region
      %vm69 = vcmask 3072
      %70 = vst.msk [vmem:[#allocation2] sm:$0xf] %vm69, 0.0
      %71 = vst.msk [vmem:[#allocation3] sm:$0xf] %vm69, 0.0
      %72 = vst.msk [vmem:[#allocation4] sm:$0xf] %vm69, 0.0
      %73 = vst.msk [vmem:[#allocation5] sm:$0xf] %vm69, 0.0
      %74 = vst.msk [vmem:[#allocation6] sm:$0xf] %vm69, 0.0
      %75 = vst.msk [vmem:[#allocation7] sm:$0xf] %vm69, 0.0
      %76 = vst.msk [vmem:[#allocation8] sm:$0xf] %vm69, 0.0
      %77 = vst.msk [vmem:[#allocation9] sm:$0xf] %vm69, 0.0
    $region37: #{tpu_custom_call.1} parent=1 // pred_fallthru
      _
    %v78 = vld [vmem:[#allocation10] sm:$0xff]
    %v79 = vld [vmem:[#allocation10 + $0x8] sm:$0xff]
    %v80 = vld [vmem:[#allocation10 + $0x10] sm:$0xff]
    %v81 = vld [vmem:[#allocation10 + $0x18] sm:$0xff]
    %v82 = vld [vmem:[#allocation13] sm:$0xff]
    %v83 = vld [vmem:[#allocation13 + $0x8] sm:$0xff]
    %v84 = vld [vmem:[#allocation13 + $0x10] sm:$0xff]
    %v85 = vld [vmem:[#allocation13 + $0x18] sm:$0xff]
    %v86 = vld [vmem:[#allocation15] sm:$0xff]
    %v87 = vld [vmem:[#allocation15 + $0x8] sm:$0xff]
    %v88 = vld [vmem:[#allocation15 + $0x10] sm:$0xff]
    %v89 = vld [vmem:[#allocation15 + $0x18] sm:$0xff]
    %v90 = vld [vmem:[#allocation16] sm:$0xff]
    %v91 = vld [vmem:[#allocation16 + $0x8] sm:$0xff]
    %v92 = vld [vmem:[#allocation16 + $0x10] sm:$0xff]
    %v93 = vld [vmem:[#allocation16 + $0x18] sm:$0xff]
    %v94 = vld [vmem:[#allocation2] sm:$0xf]
    %v95 = vmul.f32 %v78, %v78
    %v96 = vmul.f32 %v79, %v79
    %v97 = vmul.f32 %v80, %v80
    %v98 = vmul.f32 %v81, %v81
    %v103 = vcombine.high %v95, %v95
    %v104 = vcombine.high %v96, %v96
    %v105 = vcombine.high %v97, %v97
    %v106 = vcombine.high %v98, %v98
    %vm111 = vcmask 1043456
    %v112 = vsel %vm111, %v95, 0.0
    %v113 = vsel %vm111, %v103, 0.0
    %v114 = vadd.f32 %v112, %v113
    %v115 = vsel %vm111, %v96, 0.0
    %v116 = vadd.f32 %v114, %v115
    %v117 = vsel %vm111, %v104, 0.0
    %v118 = vadd.f32 %v116, %v117
    %v119 = vsel %vm111, %v97, 0.0
    %v120 = vadd.f32 %v118, %v119
    %v121 = vsel %vm111, %v105, 0.0
    %v122 = vadd.f32 %v120, %v121
    %v123 = vsel %vm111, %v98, 0.0
    %v124 = vadd.f32 %v122, %v123
    %v125 = vsel %vm111, %v106, 0.0
    %v126 = vadd.f32 %v124, %v125
    %127 = vadd.xlane.f32.xlu0 %v126
    %v128 = vpop.xlane.xlu0 %127
    %v129 = vadd.f32 %v94, %v128
    %vm130 = vcmask 3072
    %131 = vst.msk [vmem:[#allocation2] sm:$0xf] %vm130, %v129
    %v132 = vld [vmem:[#allocation3] sm:$0xf]
    %v133 = vmul.f32 %v82, %v82
    %v134 = vmul.f32 %v83, %v83
    %v135 = vmul.f32 %v84, %v84
    %v136 = vmul.f32 %v85, %v85
    %v141 = vcombine.high %v133, %v133
    %v142 = vcombine.high %v134, %v134
    %v143 = vcombine.high %v135, %v135
    %v144 = vcombine.high %v136, %v136
    %v149 = vsel %vm111, %v133, 0.0
    %v150 = vsel %vm111, %v141, 0.0
    %v151 = vadd.f32 %v149, %v150
    %v152 = vsel %vm111, %v134, 0.0
    %v153 = vadd.f32 %v151, %v152
    %v154 = vsel %vm111, %v142, 0.0
    %v155 = vadd.f32 %v153, %v154
    %v156 = vsel %vm111, %v135, 0.0
    %v157 = vadd.f32 %v155, %v156
    %v158 = vsel %vm111, %v143, 0.0
    %v159 = vadd.f32 %v157, %v158
    %v160 = vsel %vm111, %v136, 0.0
    %v161 = vadd.f32 %v159, %v160
    %v162 = vsel %vm111, %v144, 0.0
    %v163 = vadd.f32 %v161, %v162
    %164 = vadd.xlane.f32.xlu0 %v163
    %v165 = vpop.xlane.xlu0 %164
    %v166 = vadd.f32 %v132, %v165
    %167 = vst.msk [vmem:[#allocation3] sm:$0xf] %vm130, %v166
    %v168 = vld [vmem:[#allocation4] sm:$0xf]
    %v169 = vmul.f32 %v86, %v86
    %v170 = vmul.f32 %v87, %v87
    %v171 = vmul.f32 %v88, %v88
    %v172 = vmul.f32 %v89, %v89
    %v177 = vcombine.high %v169, %v169
    %v178 = vcombine.high %v170, %v170
    %v179 = vcombine.high %v171, %v171
    %v180 = vcombine.high %v172, %v172
    %v185 = vsel %vm111, %v169, 0.0
    %v186 = vsel %vm111, %v177, 0.0
    %v187 = vadd.f32 %v185, %v186
    %v188 = vsel %vm111, %v170, 0.0
    %v189 = vadd.f32 %v187, %v188
    %v190 = vsel %vm111, %v178, 0.0
    %v191 = vadd.f32 %v189, %v190
    %v192 = vsel %vm111, %v171, 0.0
    %v193 = vadd.f32 %v191, %v192
    %v194 = vsel %vm111, %v179, 0.0
    %v195 = vadd.f32 %v193, %v194
    %v196 = vsel %vm111, %v172, 0.0
    %v197 = vadd.f32 %v195, %v196
    %v198 = vsel %vm111, %v180, 0.0
    %v199 = vadd.f32 %v197, %v198
    %200 = vadd.xlane.f32.xlu0 %v199
    %v201 = vpop.xlane.xlu0 %200
    %v202 = vadd.f32 %v168, %v201
    %203 = vst.msk [vmem:[#allocation4] sm:$0xf] %vm130, %v202
    %v204 = vld [vmem:[#allocation5] sm:$0xf]
    %v205 = vmul.f32 %v90, %v90
    %v206 = vmul.f32 %v91, %v91
    %v207 = vmul.f32 %v92, %v92
    %v208 = vmul.f32 %v93, %v93
    %v213 = vcombine.high %v205, %v205
    %v214 = vcombine.high %v206, %v206
    %v215 = vcombine.high %v207, %v207
    %v216 = vcombine.high %v208, %v208
    %v221 = vsel %vm111, %v205, 0.0
    %v222 = vsel %vm111, %v213, 0.0
    %v223 = vadd.f32 %v221, %v222
    %v224 = vsel %vm111, %v206, 0.0
    %v225 = vadd.f32 %v223, %v224
    %v226 = vsel %vm111, %v214, 0.0
    %v227 = vadd.f32 %v225, %v226
    %v228 = vsel %vm111, %v207, 0.0
    %v229 = vadd.f32 %v227, %v228
    %v230 = vsel %vm111, %v215, 0.0
    %v231 = vadd.f32 %v229, %v230
    %v232 = vsel %vm111, %v208, 0.0
    %v233 = vadd.f32 %v231, %v232
    %v234 = vsel %vm111, %v216, 0.0
    %v235 = vadd.f32 %v233, %v234
    %236 = vadd.xlane.f32.xlu0 %v235
    %v237 = vpop.xlane.xlu0 %236
    %v238 = vadd.f32 %v204, %v237
    %239 = vst.msk [vmem:[#allocation5] sm:$0xf] %vm130, %v238
    %v240 = vld [vmem:[#allocation6] sm:$0xf]
    %v241 = vmul.f32 %v78, %v86
    %v242 = vmul.f32 %v79, %v87
    %v243 = vmul.f32 %v80, %v88
    %v244 = vmul.f32 %v81, %v89
    %v249 = vcombine.high %v241, %v241
    %v250 = vcombine.high %v242, %v242
    %v251 = vcombine.high %v243, %v243
    %v252 = vcombine.high %v244, %v244
    %v257 = vsel %vm111, %v241, 0.0
    %v258 = vsel %vm111, %v249, 0.0
    %v259 = vadd.f32 %v257, %v258
    %v260 = vsel %vm111, %v242, 0.0
    %v261 = vadd.f32 %v259, %v260
    %v262 = vsel %vm111, %v250, 0.0
    %v263 = vadd.f32 %v261, %v262
    %v264 = vsel %vm111, %v243, 0.0
    %v265 = vadd.f32 %v263, %v264
    %v266 = vsel %vm111, %v251, 0.0
    %v267 = vadd.f32 %v265, %v266
    %v268 = vsel %vm111, %v244, 0.0
    %v269 = vadd.f32 %v267, %v268
    %v270 = vsel %vm111, %v252, 0.0
    %v271 = vadd.f32 %v269, %v270
    %272 = vadd.xlane.f32.xlu0 %v271
    %v273 = vpop.xlane.xlu0 %272
    %v274 = vadd.f32 %v240, %v273
    %275 = vst.msk [vmem:[#allocation6] sm:$0xf] %vm130, %v274
    %v276 = vld [vmem:[#allocation7] sm:$0xf]
    %v277 = vmul.f32 %v78, %v90
    %v278 = vmul.f32 %v79, %v91
    %v279 = vmul.f32 %v80, %v92
    %v280 = vmul.f32 %v81, %v93
    %v285 = vcombine.high %v277, %v277
    %v286 = vcombine.high %v278, %v278
    %v287 = vcombine.high %v279, %v279
    %v288 = vcombine.high %v280, %v280
    %v293 = vsel %vm111, %v277, 0.0
    %v294 = vsel %vm111, %v285, 0.0
    %v295 = vadd.f32 %v293, %v294
    %v296 = vsel %vm111, %v278, 0.0
    %v297 = vadd.f32 %v295, %v296
    %v298 = vsel %vm111, %v286, 0.0
    %v299 = vadd.f32 %v297, %v298
    %v300 = vsel %vm111, %v279, 0.0
    %v301 = vadd.f32 %v299, %v300
    %v302 = vsel %vm111, %v287, 0.0
    %v303 = vadd.f32 %v301, %v302
    %v304 = vsel %vm111, %v280, 0.0
    %v305 = vadd.f32 %v303, %v304
    %v306 = vsel %vm111, %v288, 0.0
    %v307 = vadd.f32 %v305, %v306
    %308 = vadd.xlane.f32.xlu0 %v307
    %v309 = vpop.xlane.xlu0 %308
    %v310 = vadd.f32 %v276, %v309
    %311 = vst.msk [vmem:[#allocation7] sm:$0xf] %vm130, %v310
    %v312 = vld [vmem:[#allocation8] sm:$0xf]
    %v313 = vmul.f32 %v82, %v86
    %v314 = vmul.f32 %v83, %v87
    %v315 = vmul.f32 %v84, %v88
    %v316 = vmul.f32 %v85, %v89
    %v321 = vcombine.high %v313, %v313
    %v322 = vcombine.high %v314, %v314
    %v323 = vcombine.high %v315, %v315
    %v324 = vcombine.high %v316, %v316
    %v329 = vsel %vm111, %v313, 0.0
    %v330 = vsel %vm111, %v321, 0.0
    %v331 = vadd.f32 %v329, %v330
    %v332 = vsel %vm111, %v314, 0.0
    %v333 = vadd.f32 %v331, %v332
    %v334 = vsel %vm111, %v322, 0.0
    %v335 = vadd.f32 %v333, %v334
    %v336 = vsel %vm111, %v315, 0.0
    %v337 = vadd.f32 %v335, %v336
    %v338 = vsel %vm111, %v323, 0.0
    %v339 = vadd.f32 %v337, %v338
    %v340 = vsel %vm111, %v316, 0.0
    %v341 = vadd.f32 %v339, %v340
    %v342 = vsel %vm111, %v324, 0.0
    %v343 = vadd.f32 %v341, %v342
    %344 = vadd.xlane.f32.xlu0 %v343
    %v345 = vpop.xlane.xlu0 %344
    %v346 = vadd.f32 %v312, %v345
    %347 = vst.msk [vmem:[#allocation8] sm:$0xf] %vm130, %v346
    %v348 = vld [vmem:[#allocation9] sm:$0xf]
    %v349 = vmul.f32 %v82, %v90
    %v350 = vmul.f32 %v83, %v91
    %v351 = vmul.f32 %v84, %v92
    %v352 = vmul.f32 %v85, %v93
    %v357 = vcombine.high %v349, %v349
    %v358 = vcombine.high %v350, %v350
    %v359 = vcombine.high %v351, %v351
    %v360 = vcombine.high %v352, %v352
    %v365 = vsel %vm111, %v349, 0.0
    %v366 = vsel %vm111, %v357, 0.0
    %v367 = vadd.f32 %v365, %v366
    %v368 = vsel %vm111, %v350, 0.0
    %v369 = vadd.f32 %v367, %v368
    %v370 = vsel %vm111, %v358, 0.0
    %v371 = vadd.f32 %v369, %v370
    %v372 = vsel %vm111, %v351, 0.0
    %v373 = vadd.f32 %v371, %v372
    %v374 = vsel %vm111, %v359, 0.0
    %v375 = vadd.f32 %v373, %v374
    %v376 = vsel %vm111, %v352, 0.0
    %v377 = vadd.f32 %v375, %v376
    %v378 = vsel %vm111, %v360, 0.0
    %v379 = vadd.f32 %v377, %v378
    %380 = vadd.xlane.f32.xlu0 %v379
    %v381 = vpop.xlane.xlu0 %380
    %v382 = vadd.f32 %v348, %v381
    %383 = vst.msk [vmem:[#allocation9] sm:$0xf] %vm130, %v382
    // Predicated region
    $region38: #{tpu_custom_call.1} parent=1 // pred_check
      %p384 = pneg %p65
    $region39: #{tpu_custom_call.1} parent=1 // pred_check_branch
      %386 = sbr.rel (%p384) target = $region41
    $region40: #{tpu_custom_call.1} parent=1 // pred_region
      %v387 = vld [vmem:[#allocation2] sm:$0xf]
      %v388 = vld [vmem:[#allocation4] sm:$0xf]
      %v389 = vld [vmem:[#allocation6] sm:$0xf]
      %v390 = vadd.f32 %v387, 1e-08
      %v391 = vrcp.pop %v390
      %v392 = vmul.f32 %v389, %v391
      %v393 = vmul.f32 %v392, %v392
      %v394 = vmul.f32 %v393, %v387
      %v395 = vmul.f32 %v392, 2.0
      %v396 = vmul.f32 %v395, %v389
      %v397 = vsub.f32 %v388, %v396
      %v398 = vadd.f32 %v397, %v394
      %v399 = vadd.f32 %v398, 1e-08
      %v400 = vrcp.pop %v399
      %v401 = vmul.f32 %v394, %v400
      %v402 = vadd.f32 %v401, 1e-08
      %v403 = vlog2.pop %v402
      %v404 = vmul.f32 %v403, 0.6931472
      %v405 = vrcp.pop 2.3025851
      %v406 = vmul.f32 %v404, %v405
      %v407 = vmul.f32 %v406, 10.0
      %v408 = vld [vmem:[#allocation5] sm:$0xf]
      %v409 = vld [vmem:[#allocation7] sm:$0xf]
      %v410 = vmul.f32 %v409, %v391
      %v411 = vmul.f32 %v410, %v410
      %v412 = vmul.f32 %v411, %v387
      %v413 = vmul.f32 %v410, 2.0
      %v414 = vmul.f32 %v413, %v409
      %v415 = vsub.f32 %v408, %v414
      %v416 = vadd.f32 %v415, %v412
      %v417 = vadd.f32 %v416, 1e-08
      %v418 = vrcp.pop %v417
      %v419 = vmul.f32 %v412, %v418
      %v420 = vadd.f32 %v419, 1e-08
      %v421 = vlog2.pop %v420
      %v422 = vmul.f32 %v421, 0.6931472
      %v423 = vmul.f32 %v422, %v405
      %v424 = vmul.f32 %v423, 10.0
      %v425 = vld [vmem:[#allocation3] sm:$0xf]
      %v426 = vld [vmem:[#allocation8] sm:$0xf]
      %v427 = vadd.f32 %v425, 1e-08
      %v428 = vrcp.pop %v427
      %v429 = vmul.f32 %v426, %v428
      %v430 = vmul.f32 %v429, %v429
      %v431 = vmul.f32 %v430, %v425
      %v432 = vmul.f32 %v429, 2.0
      %v433 = vmul.f32 %v432, %v426
      %v434 = vsub.f32 %v388, %v433
      %v435 = vadd.f32 %v434, %v431
      %v436 = vadd.f32 %v435, 1e-08
      %v437 = vrcp.pop %v436
      %v438 = vmul.f32 %v431, %v437
      %v439 = vadd.f32 %v438, 1e-08
      %v440 = vlog2.pop %v439
      %v441 = vmul.f32 %v440, 0.6931472
      %v442 = vmul.f32 %v441, %v405
      %v443 = vmul.f32 %v442, 10.0
      %v444 = vld [vmem:[#allocation9] sm:$0xf]
      %v445 = vmul.f32 %v444, %v428
      %v446 = vmul.f32 %v445, %v445
      %v447 = vmul.f32 %v446, %v425
      %v448 = vmul.f32 %v445, 2.0
      %v449 = vmul.f32 %v448, %v444
      %v450 = vsub.f32 %v408, %v449
      %v451 = vadd.f32 %v450, %v447
      %v452 = vadd.f32 %v451, 1e-08
      %v453 = vrcp.pop %v452
      %v454 = vmul.f32 %v447, %v453
      %v455 = vadd.f32 %v454, 1e-08
      %v456 = vlog2.pop %v455
      %v457 = vmul.f32 %v456, 0.6931472
      %v458 = vmul.f32 %v457, %v405
      %v459 = vmul.f32 %v458, 10.0
      %v460 = vadd.f32 %v407, %v459
      %v461 = vmul.f32 %v460, 0.5
      %v462 = vadd.f32 %v424, %v443
      %v463 = vmul.f32 %v462, 0.5
      %v464 = vmax.f32 %v461, %v463
      %v465 = vsel %vm130, %v464, 0.0
      %466 = vadd.xlane.f32.xlu0 %v465
      %v467 = vpop.xlane.xlu0 %466
      %v468 = vrot.slane %v467, 4
      %v469 = vadd.f32 %v467, %v468
      %v470 = vrot.slane %v469, 2
      %v471 = vadd.f32 %v469, %v470
      %v472 = vrot.slane %v471, 1
      %v473 = vadd.f32 %v471, %v472
      %s474 = vtos %v473
      %v475 = vrcp.pop 4.0
      %s476 = vtos %v475
      %s477 = smul.f32 %s474, %s476
      %s478 = ssub.f32 0.0, %s477
      %v479 = vstv %s478
      %vm480 = vcmask 0
      %481 = vst.msk [vmem:[#allocation18] sm:$0x1] %vm480, %v479
    $region41: #{tpu_custom_call.1} parent=1 // pred_fallthru
      _
    // Predicated region
    $region42: #{tpu_custom_call.1} parent=1 // pred_check
      _
    $region43: #{tpu_custom_call.1} parent=1 // pred_check_branch
      %483 = sbr.rel (0) target = $region45
    $region44: #{tpu_custom_call.1} parent=1 // pred_region
      %s485 = ssub.s32 16, 16
      %486 = vsyncadd [#allocation12], %s485
      %s488 = sshll.u32 [#allocation18], 4
      %s489 = int_to_ptr.vmem [resolvable:$true] %s488
      %491 = dma.vmem_to_hbm [thread:$0]  %s489, 16, %s4, [#allocation12]
    $region45: #{tpu_custom_call.1} parent=1 // pred_fallthru
      _
    // Predicated region
    $region46: #{tpu_custom_call.1} parent=1 // pred_check
      _
    $region47: #{tpu_custom_call.1} parent=1 // pred_check_branch
      %493 = sbr.rel (0) target = $region49
    $region48: #{tpu_custom_call.1} parent=1 // pred_region
      %494 = dma.done [#allocation12], 16
    $region49: #{tpu_custom_call.1} parent=1 // pred_fallthru
      _
    %495 = vsyncpa [#allocation11], 1
    %496 = vsyncpa [#allocation14], 1
    %497 = vsyncpa [#allocation17], 1
    %498 = vsyncpa [#allocation12], 1

</llo_original>
